<compile_context>
chip_gen: v5e
topology: v5e:2x2
jax: 0.10.0
libtpu: 0.0.40
codegen_flags: <defaults>
</compile_context>

<pallas_src>
import math

import jax
import jax.numpy as jnp
from jax import lax
from jax.experimental import pallas as pl
from jax.experimental.pallas import tpu as pltpu


def _conv_gemm_kernel(x_ref, w_ref, b_ref, o_ref):
    # x_ref: (Kdim, TL) f32   -- one batch element, Cin*K features x length tile
    # w_ref: (Cout, Kdim) f32 -- conv weight, constant block (fetched once)
    # b_ref: (Cout, 1)  f32   -- bias, constant block (broadcast over lanes)
    # o_ref: (Cout, TL) f32   -- length on lanes, already channel-major
    acc = jnp.dot(w_ref[...], x_ref[...], preferred_element_type=jnp.float32)
    o_ref[...] = acc + b_ref[...]


def _pick_length_tile(L_out, Kdim, Cout):
    """Lane (length) tile size.  Use the full length for modest L_out (full-dim blocks
    are exempt from the (8,128) rule and avoid ragged edges); otherwise pick the largest
    128-multiple whose double-buffered footprint leaves headroom in v7x's 32 MiB scoped
    VMEM (which also fits v5e/v6e)."""
    if L_out <= 2048:
        return L_out
    budget = 24 * 1024 * 1024
    tl = 2048
    while tl > 128:
        footprint = 2 * 4 * tl * (Kdim + Cout) + 4 * Cout * (Kdim + 1)
        if footprint <= budget:
            break
        tl //= 2
    return tl


def init_params(key, in_channels, out_channels, kernel_size=1):
    """Deterministic init mimicking nn.Conv1d default (uniform +/- 1/sqrt(fan_in))."""
    kw, kb = jax.random.split(key)
    bound = 1.0 / math.sqrt(in_channels * kernel_size)
    weight = jax.random.uniform(
        kw, (out_channels, in_channels, kernel_size), jnp.float32, -bound, bound)
    bias = jax.random.uniform(kb, (out_channels,), jnp.float32, -bound, bound)
    return {"weight": weight, "bias": bias}  # PyTorch Conv1d layout (O, I, K)


def downsample_block(x, params, stride=1):
    """x: (B, in_channels, L) f32 -> (B, out_channels, L_out) f32."""
    weight = params["weight"]          # (Cout, Cin, K)
    bias = params["bias"]              # (Cout,)
    B, Cin, L = x.shape
    Cout, _, K = weight.shape
    L_out = (L - K) // stride + 1
    assert L_out >= 1

    if K == 1 and stride == 1:
        # Module defaults: feed x straight in -- zero wrapper-side data movement.
        xp = x                                                     # (B, Cin, L)
        w_mat = weight[:, :, 0]                                    # (Cout, Cin)
    else:
        # TODO(synk): for large Cin*K move the tap reduction into the kernel (reduction
        # grid axis + f32 VMEM accumulator) instead of materializing im2col in HBM.
        taps = [lax.slice(x, (0, 0, k),
                          (B, Cin, k + stride * (L_out - 1) + 1),
                          (1, 1, stride)) for k in range(K)]       # each (B, Cin, L_out)
        xp = jnp.concatenate(taps, axis=1)                         # (B, K*Cin, L_out)
        w_mat = jnp.transpose(weight, (0, 2, 1)).reshape(Cout, K * Cin)

    Kdim = xp.shape[1]
    b_col = bias.reshape(Cout, 1)

    TL = _pick_length_tile(L_out, Kdim, Cout)
    grid = (B, pl.cdiv(L_out, TL))     # ragged last length tile: Pallas masks the store

    footprint = 2 * 4 * TL * (Kdim + Cout) + 4 * Cout * (Kdim + 1)
    compiler_kwargs = dict(dimension_semantics=("parallel", "parallel"))
    if footprint > 12 * 1024 * 1024:
        # Raise the scoped-VMEM limit only when the tiles actually need it; <= 48 MiB
        # keeps headroom under v7x's 64 MiB physical VMEM.
        compiler_kwargs["vmem_limit_bytes"] = min(2 * footprint, 48 * 1024 * 1024)

    out = pl.pallas_call(
        _conv_gemm_kernel,
        out_shape=jax.ShapeDtypeStruct((B, Cout, L_out), jnp.float32),
        grid=grid,
        in_specs=[
            pl.BlockSpec((None, Kdim, TL), lambda b, l: (b, 0, l)),
            # Constant index_maps: weight / bias are DMA'd once and stay resident.
            # TODO(synk): for realistic large weights add pipeline_mode=pl.Buffered(1)
            # and an N (Cout) grid axis tiled in 256-wide blocks (v6e/v7x MXU width).
            pl.BlockSpec((Cout, Kdim), lambda b, l: (0, 0)),
            pl.BlockSpec((Cout, 1), lambda b, l: (0, 0)),
        ],
        out_specs=pl.BlockSpec((None, Cout, TL), lambda b, l: (b, 0, l)),
        compiler_params=pltpu.CompilerParams(**compiler_kwargs),
    )(xp, w_mat, b_col)
    return out                                                     # (B, Cout, L_out)


def _reference(x, params, stride=1):
    """Pure-JAX f32 reference of the PyTorch Conv1d forward."""
    y = lax.conv_general_dilated(
        x, params["weight"], window_strides=(stride,), padding="VALID",
        dimension_numbers=("NCH", "OIH", "NCH"))
    return y + params["bias"][None, :, None]


if __name__ == "__main__":
    B, Cin, Cout, L = 2, 32, 16, 16       # module defaults: kernel_size=1, stride=1
    key = jax.random.PRNGKey(0)
    kx, kp = jax.random.split(key)

    x = jax.random.normal(kx, (B, Cin, L), jnp.float32)
    params = init_params(kp, Cin, Cout, kernel_size=1)

    out = downsample_block(x, params, stride=1)
    out = jax.block_until_ready(out)

    ref = _reference(x, params, stride=1)
    assert out.shape == (B, Cout, L)
    # Full f32 operands with f32 MXU accumulation -> tight parity vs the f32 reference.
    assert jnp.allclose(out, ref, atol=1e-4, rtol=1e-4), "mismatch vs reference"
    print("KERNEL_OK")
</pallas_src>

<mosaic_0001>
module attributes {stable_mosaic.version = 11 : i64} {
  func.func @_conv_gemm_kernel(%arg0: i32, %arg1: i32, %arg2: memref<1x32x16xf32, #tpu.memory_space<vmem>>, %arg3: memref<16x32xf32, #tpu.memory_space<vmem>>, %arg4: memref<16x1xf32, #tpu.memory_space<vmem>>, %arg5: memref<1x16x16xf32, #tpu.memory_space<vmem>>) attributes {dimension_semantics = [#tpu.dimension_semantics<parallel>, #tpu.dimension_semantics<parallel>], iteration_bounds = array<i64: 2, 1>, scalar_prefetch = 0 : i64, scratch_operands = 0 : i64, tpu.core_type = #tpu.core_type<tc>, window_params = [{transform_indices = @transform_0, window_bounds = array<i64: 1, 32, 16>}, {pipeline_mode = #tpu.pipeline_mode<synchronous>, transform_indices = @transform_1, window_bounds = array<i64: 16, 32>}, {pipeline_mode = #tpu.pipeline_mode<synchronous>, transform_indices = @transform_2, window_bounds = array<i64: 16, 1>}, {transform_indices = @transform_3, window_bounds = array<i64: 1, 16, 16>}]} {
    %c0 = arith.constant 0 : index
    %c0_0 = arith.constant 0 : index
    %0 = vector.load %arg3[%c0, %c0_0] : memref<16x32xf32, #tpu.memory_space<vmem>>, vector<16x32xf32>
    %c0_1 = arith.constant 0 : index
    %c0_2 = arith.constant 0 : index
    %c0_3 = arith.constant 0 : index
    %1 = vector.load %arg2[%c0_1, %c0_2, %c0_3] : memref<1x32x16xf32, #tpu.memory_space<vmem>>, vector<1x32x16xf32>
    %2 = vector.shape_cast %1 : vector<1x32x16xf32> to vector<32x16xf32>
    %cst = arith.constant dense<0.000000e+00> : vector<16x16xf32>
    %3 = tpu.matmul %0, %2, %cst {dimension_numbers = #tpu.dot_dimension_numbers<[1], [0], [0], [1], [0, 0, 1, 1], [], []>} : vector<16x32xf32>, vector<32x16xf32>, vector<16x16xf32> -> vector<16x16xf32>
    %c0_4 = arith.constant 0 : index
    %c0_5 = arith.constant 0 : index
    %4 = vector.load %arg4[%c0_4, %c0_5] : memref<16x1xf32, #tpu.memory_space<vmem>>, vector<16x1xf32>
    %5 = vector.broadcast %4 : vector<16x1xf32> to vector<16x16xf32>
    %6 = arith.addf %3, %5 : vector<16x16xf32>
    %c0_6 = arith.constant 0 : index
    %c0_7 = arith.constant 0 : index
    %c0_8 = arith.constant 0 : index
    %7 = vector.load %arg5[%c0_6, %c0_7, %c0_8] : memref<1x16x16xf32, #tpu.memory_space<vmem>>, vector<1x16x16xf32>
    %8 = vector.shape_cast %7 : vector<1x16x16xf32> to vector<16x16xf32>
    %9 = vector.shape_cast %6 : vector<16x16xf32> to vector<1x16x16xf32>
    tpu.vector_store %arg5[%c0_6, %c0_7, %c0_8], %9 {strides = array<i32>} : memref<1x16x16xf32, #tpu.memory_space<vmem>>, vector<1x16x16xf32>,
    return
  }
  func.func @transform_0(%arg0: i32, %arg1: i32) -> (i32, i32, i32) {
    %c0_i32 = arith.constant 0 : i32
    %c0_i32_0 = arith.constant 0 : i32
    return %arg0, %c0_i32, %arg1 : i32, i32, i32
  }
  func.func @transform_1(%arg0: i32, %arg1: i32) -> (i32, i32) {
    %c0_i32 = arith.constant 0 : i32
    %c0_i32_0 = arith.constant 0 : i32
    %c0_i32_1 = arith.constant 0 : i32
    return %c0_i32, %c0_i32_0 : i32, i32
  }
  func.func @transform_2(%arg0: i32, %arg1: i32) -> (i32, i32) {
    %c0_i32 = arith.constant 0 : i32
    %c0_i32_0 = arith.constant 0 : i32
    %c0_i32_1 = arith.constant 0 : i32
    return %c0_i32, %c0_i32_0 : i32, i32
  }
  func.func @transform_3(%arg0: i32, %arg1: i32) -> (i32, i32, i32) {
    %c0_i32 = arith.constant 0 : i32
    %c0_i32_0 = arith.constant 0 : i32
    return %arg0, %c0_i32, %arg1 : i32, i32, i32
  }
}

</mosaic_0001>

<llo_original>
// kernel: tpu_custom_call.1
$region0: #{tpu_custom_call.1}
  #allocation0 [shape = 'u32[]', space=smem, size = 0x4, offset = 0x4, fixed_abs, tag = 'smem constant byte address 0x4 - core index']
  #allocation1 [shape = 'u32[72,128]{1,0:T(1,128)}', space=vmem, size = 0x9000, scoped, tag = 'internal scratch']
  %s0 = inlined_call_operand.vmem [shape: f32[2,32,16], index: 0, kind: input, shape index: {}]
  %s1 = inlined_call_operand.vmem [shape: f32[16,32], index: 1, kind: input, shape index: {}]
  %s2 = inlined_call_operand.vmem [shape: f32[16,1], index: 2, kind: input, shape index: {}]
  %s3 = inlined_call_operand.hbm [shape: f32[2,16,16], index: 3, kind: output, shape index: {}]
  %s4 = sld [smem:[#allocation0]]
  $region45: #{tpu_custom_call.1} parent=0
    _
  %s6 = ssub.s32 1, %s4
  %s7 = scalar_select 0, %s6, %s4
  $region1: #{tpu_custom_call.1} parent=0
    #allocation2 [shape = 'u8[16384]{0}', space=vmem, size = 0x4000, scoped, tag = 'output window, operand 0']
    #allocation3 [shape = 's32[2]{0}', space=sflag, size = 0x8, scoped, tag = 'scoped memory for tpu_custom_call.1']
    %8 = vsyncpa [#allocation3], 0
    %s9 = scalar_lea.sflag [#allocation3], 1
    %10 = vsyncpa %s9, 0
    loop: start=0, step=1, limit=4
    $region2: #{tpu_custom_call.1} parent=1 // loop_pre_header
      _
    $region3: #{tpu_custom_call.1} parent=1 // loop_header
      %s12 = sphi 0, %s16
      %p13 = scmp.ge.s32.totalorder %s12, 4
      %s19 = sphi 0, %s31
      %s20 = sphi 0, %s27
      %s21 = sphi 0, %s19
      %s22 = sphi 0, %s20
      %s23 = sphi 0, %s21
      %s24 = sphi 0, %s22
      %s36 = sphi 0, %s38
      %s39 = sphi 0, %s36
      %s40 = sphi 0, %s39
      %s56 = sphi 0, %s40
      %s60 = sphi 0, %s60
      %s62 = sphi 0, %s60
      %s63 = sphi 0, %s62
      %s77 = sphi 0, %s63
      %s81 = sphi 0, %s81
      %s83 = sphi 0, %s81
      %s84 = sphi 0, %s83
      %s98 = sphi 0, %s84
      %s106 = sphi 0, %s108
      %s109 = sphi 0, %s106
      %s110 = sphi 0, %s109
      %s126 = sphi 0, %s110
    $region4: #{tpu_custom_call.1} parent=1 // loop_header_branch
      %15 = sbr.rel (%p13) target = $region8
    $region5: #{tpu_custom_call.1} parent=1 // loop_body
      %s17 = ssub.s32 %s12, 1
      %s18 = ssub.s32 %s12, 2
      %s25 = sadd.s32 1, %s20
      %p26 = scmp.ge.s32.totalorder %s25, 1
      %s27 = scalar_select %p26, 0, %s25
      %s28 = sadd.s32 1, %s19
      %s29 = scalar_select %p26, %s28, %s19
      %p30 = scmp.ge.s32.totalorder %s29, 2
      %s31 = scalar_select %p30, 0, %s29
      %s32 = ssub.s32 %s19, %s31
      %s33 = ssub.s32 %s20, %s27
      %s34 = sor.u32 %s32, %s33
      %p35 = scmp.eq.s32.totalorder %s34, 0
      %s37 = sadd.s32 %s36, 1
      %s38 = scalar_select %p35, %s36, %s37
      %p41 = pneg %p35
      %p42 = scmp.eq.s32.totalorder %s12, 1
      %p43 = por %p41, %p42
      %p44 = scmp.ne.s32.totalorder %s36, %s39
      %p45 = scmp.eq.s32.totalorder %s12, 0
      %p46 = por %p44, %p45
      %p47 = scmp.ne.s32.totalorder %s36, %s39
      %p48 = scmp.eq.s32.totalorder %s17, 1
      %p49 = por %p47, %p48
      %p50 = scmp.ne.s32.totalorder %s39, %s40
      %p51 = scmp.eq.s32.totalorder %s17, 0
      %p52 = por %p50, %p51
      %p53 = scmp.ne.s32.totalorder %s39, %s40
      %p54 = scmp.eq.s32.totalorder %s18, 1
      %p55 = por %p53, %p54
      %p57 = scmp.ne.s32.totalorder %s40, %s56
      %p58 = scmp.eq.s32.totalorder %s18, 0
      %p59 = por %p57, %p58
      %s61 = sadd.s32 %s60, 1
      %p64 = scmp.eq.s32.totalorder %s12, 1
      %p65 = scmp.ne.s32.totalorder %s60, %s62
      %p66 = scmp.eq.s32.totalorder %s12, 0
      %p67 = por %p65, %p66
      %p68 = scmp.ne.s32.totalorder %s60, %s62
      %p69 = scmp.eq.s32.totalorder %s17, 1
      %p70 = por %p68, %p69
      %p71 = scmp.ne.s32.totalorder %s62, %s63
      %p72 = scmp.eq.s32.totalorder %s17, 0
      %p73 = por %p71, %p72
      %p74 = scmp.ne.s32.totalorder %s62, %s63
      %p75 = scmp.eq.s32.totalorder %s18, 1
      %p76 = por %p74, %p75
      %p78 = scmp.ne.s32.totalorder %s63, %s77
      %p79 = scmp.eq.s32.totalorder %s18, 0
      %p80 = por %p78, %p79
      %s82 = sadd.s32 %s81, 1
      %p85 = scmp.eq.s32.totalorder %s12, 1
      %p86 = scmp.ne.s32.totalorder %s81, %s83
      %p87 = scmp.eq.s32.totalorder %s12, 0
      %p88 = por %p86, %p87
      %p89 = scmp.ne.s32.totalorder %s81, %s83
      %p90 = scmp.eq.s32.totalorder %s17, 1
      %p91 = por %p89, %p90
      %p92 = scmp.ne.s32.totalorder %s83, %s84
      %p93 = scmp.eq.s32.totalorder %s17, 0
      %p94 = por %p92, %p93
      %p95 = scmp.ne.s32.totalorder %s83, %s84
      %p96 = scmp.eq.s32.totalorder %s18, 1
      %p97 = por %p95, %p96
      %p99 = scmp.ne.s32.totalorder %s84, %s98
      %p100 = scmp.eq.s32.totalorder %s18, 0
      %p101 = por %p99, %p100
      %s102 = ssub.s32 %s19, %s31
      %s103 = ssub.s32 %s20, %s27
      %s104 = sor.u32 %s102, %s103
      %p105 = scmp.eq.s32.totalorder %s104, 0
      %s107 = sadd.s32 %s106, 1
      %s108 = scalar_select %p105, %s106, %s107
      %p111 = pneg %p105
      %p112 = scmp.eq.s32.totalorder %s12, 1
      %p113 = por %p111, %p112
      %p114 = scmp.ne.s32.totalorder %s106, %s109
      %p115 = scmp.eq.s32.totalorder %s12, 0
      %p116 = por %p114, %p115
      %p117 = scmp.ne.s32.totalorder %s106, %s109
      %p118 = scmp.eq.s32.totalorder %s17, 1
      %p119 = por %p117, %p118
      %p120 = scmp.ne.s32.totalorder %s109, %s110
      %p121 = scmp.eq.s32.totalorder %s17, 0
      %p122 = por %p120, %p121
      %p123 = scmp.ne.s32.totalorder %s109, %s110
      %p124 = scmp.eq.s32.totalorder %s18, 1
      %p125 = por %p123, %p124
      %p127 = scmp.ne.s32.totalorder %s110, %s126
      %p128 = scmp.eq.s32.totalorder %s18, 0
      %p129 = por %p127, %p128
      %p130 = scmp.le.s32.totalorder 1, %s12
      %p131 = scmp.lt.s32.totalorder %s12, 3
      %p132 = pnand %p130, %p131
      %p133 = pneg %p132
      // Predicated region
      $region9: #{tpu_custom_call.1} parent=5 // pred_check
        _
      $region10: #{tpu_custom_call.1} parent=5 // pred_check_branch
        %135 = sbr.rel (%p132) target = $region12
      $region11: #{tpu_custom_call.1} parent=5 // pred_region
        %s136 = ssub.s32 %s12, 1
        // Predicated region
        $region13: #{tpu_custom_call.1} parent=11 // pred_check
          %p137 = pneg %p73
        $region14: #{tpu_custom_call.1} parent=11 // pred_check_branch
          %139 = sbr.rel (%p137) target = $region16
        $region15: #{tpu_custom_call.1} parent=11 // pred_region
          _
        $region16: #{tpu_custom_call.1} parent=11 // pred_fallthru
          _
        // Predicated region
        $region17: #{tpu_custom_call.1} parent=11 // pred_check
          %p140 = pneg %p94
        $region18: #{tpu_custom_call.1} parent=11 // pred_check_branch
          %142 = sbr.rel (%p140) target = $region20
        $region19: #{tpu_custom_call.1} parent=11 // pred_region
          _
        $region20: #{tpu_custom_call.1} parent=11 // pred_fallthru
          _
      $region12: #{tpu_custom_call.1} parent=5 // pred_fallthru
        _
      %p143 = scmp.lt.s32.totalorder %s12, 2
      // Predicated region
      $region21: #{tpu_custom_call.1} parent=5 // pred_check
        %p144 = pneg %p143
      $region22: #{tpu_custom_call.1} parent=5 // pred_check_branch
        %146 = sbr.rel (%p144) target = $region24
      $region23: #{tpu_custom_call.1} parent=5 // pred_region
        // Predicated region
        $region25: #{tpu_custom_call.1} parent=23 // pred_check
          %p147 = pneg %p46
        $region26: #{tpu_custom_call.1} parent=23 // pred_check_branch
          %149 = sbr.rel (%p147) target = $region28
        $region27: #{tpu_custom_call.1} parent=23 // pred_region
          %p150 = scmp.lt.s32.totalorder %s19, 1
          %s151 = scalar_select %p150, %s19, 1
          %p152 = scmp.lt.s32.totalorder %s20, 0
          %s153 = scalar_select %p152, %s20, 0
          %s154 = smul.addr %s151, 4
          %s155 = sadd.s32 %s153, %s154
          %s156 = smul.addr %s155, 8
          %s157 = scalar_lea.vmem %s0, %s156
        $region28: #{tpu_custom_call.1} parent=23 // pred_fallthru
          _
      $region24: #{tpu_custom_call.1} parent=5 // pred_fallthru
        _
      %p158 = scmp.le.s32.totalorder 1, %s12
      %p159 = scmp.lt.s32.totalorder %s12, 3
      %p160 = pnand %p158, %p159
      %p161 = pneg %p160
      // Predicated region
      $region29: #{tpu_custom_call.1} parent=5 // pred_check
        _
      $region30: #{tpu_custom_call.1} parent=5 // pred_check_branch
        %163 = sbr.rel (%p160) target = $region32
      $region31: #{tpu_custom_call.1} parent=5 // pred_region
        %s164 = ssub.s32 %s12, 1
        %p165 = scmp.lt.s32.totalorder %s21, 1
        %s166 = scalar_select %p165, %s21, 1
        %p167 = scmp.lt.s32.totalorder %s22, 0
        %s168 = scalar_select %p167, %s22, 0
        %s169 = smul.addr %s166, 4
        %s170 = sadd.s32 %s168, %s169
        %s171 = smul.addr %s170, 8
        %s172 = scalar_lea.vmem %s0, %s171
        %p173 = pneg %p52
        %p174 = pneg %p49
        %p175 = pneg %p73
        %p176 = pneg %p70
        %p177 = pneg %p94
        %p178 = pneg %p91
        %p179 = pneg %p122
        %p180 = pneg %p119
        %s181 = sand.u32 %s109, 1
        %s182 = scalar_lea.sflag [#allocation3], %s181
        %s183 = sand.u32 %s109, 1
        %s184 = smul.addr %s183, 16
        %s185 = scalar_lea.vmem [#allocation2], %s184
        %p186 = scmp.lt.s32.totalorder %s21, 1
        %s187 = scalar_select %p186, %s21, 1
        %p188 = scmp.lt.s32.totalorder %s22, 0
        %s189 = scalar_select %p188, %s22, 0
        %s190 = smul.addr %s187, 4
        %s191 = sadd.s32 %s189, %s190
        %s192 = smul.addr %s191, 8
        %s193 = scalar_lea.vmem %s0, %s192
        %v194 = vld [vmem:[%s1] sm:$0xff]
        %v195 = vld [vmem:[%s1 + $0x8] sm:$0xff]
        %v196 = vld [vmem:[%s193] sm:$0xff]
        %v197 = vld [vmem:[%s193 + $0x8] sm:$0xff]
        %v198 = vld [vmem:[%s193 + $0x10] sm:$0xff]
        %v199 = vld [vmem:[%s193 + $0x18] sm:$0xff]
        %v200 = vld [vmem:[%s2] sm:$0xff]
        %v201 = vld [vmem:[%s2 + $0x8] sm:$0xff]
        %203 = vset.pattern.permute.xlu0 0
        %204 = vperm.xlu0 %203, %v200
        %v205 = vpop.permute.xlu0 %204
        %208 = vset.pattern.permute.xlu0 0
        %209 = vperm.xlu0 %208, %v201
        %v210 = vpop.permute.xlu0 %209
        %vm212 = vcmask 261120
        %v214 = vsel %vm212, %v194, 0
        %v217 = vsel %vm212, %v195, 0
        %219 = vmatpush.msra.mxu0 0.0
        %220 = vmatpush.msra.mxu0 0.0
        %221 = vmatpush.msra.mxu0 0.0
        %222 = vmatpush.msra.mxu0 0.0
        %223 = vmatpush.msra.mxu0 0.0
        %224 = vmatpush.msra.mxu0 0.0
        %225 = vmatpush.msra.mxu0 0.0
        %226 = vmatpush.msra.mxu0 0.0
        %227 = vmatpush.msra.mxu0 0.0
        %228 = vmatpush.msra.mxu0 0.0
        %229 = vmatpush.msra.mxu0 0.0
        %230 = vmatpush.msra.mxu0 0.0
        %231 = vmatpush.msra.mxu0 %v199
        %232 = vmatpush.msra.mxu0 %v198
        %233 = vmatpush.msra.mxu0 %v197
        %234 = vmatpush.msra.mxu0 %v196
        %235 = vmatmul.f32.gmra.mxu0 %v214
        %v236 = vpop.f32.mrf.mxu0
        %v237 = vadd.f32 %v205, %v236
        %238 = vmatmul.f32.gmra.mxu0 %v217
        %v239 = vpop.f32.mrf.mxu0
        %v240 = vadd.f32 %v210, %v239
        %241 = vdwg.mxu0
        %vm242 = vcmask 130048
        %243 = vst.msk [vmem:[%s185] sm:$0xff] %vm242, %v237
        %244 = vst.msk [vmem:[%s185 + $0x8] sm:$0xff] %vm242, %v240
        %s245 = sand.u32 %s109, 1
        %s246 = scalar_lea.sflag [#allocation3], %s245
        %s247 = sand.u32 %s109, 1
        %s248 = smul.addr %s247, 16
        %s249 = scalar_lea.vmem [#allocation2], %s248
        // Predicated region
        $region33: #{tpu_custom_call.1} parent=31 // pred_check
          %p250 = pneg %p119
        $region34: #{tpu_custom_call.1} parent=31 // pred_check_branch
          %252 = sbr.rel (%p250) target = $region36
        $region35: #{tpu_custom_call.1} parent=31 // pred_region
          %254 = vsyncadd %s246, 0
          %s255 = smul.addr %s21, 2
          %s256 = sadd.s32 %s22, %s255
          %s257 = smul.addr %s256, 8
          %s258 = scalar_lea.hbm %s3, %s257
          %s259 = sshll.u32 %s249, 4
          %s260 = int_to_ptr.vmem [resolvable:$true] %s259
          %s261 = sshll.u32 %s258, 4
          %s262 = int_to_ptr.hbm [resolvable:$true] %s261
          %267 = dma.vmem_to_hbm [thread:$0]  %s260, 256, %s262, %s246, 128, 128, 8
        $region36: #{tpu_custom_call.1} parent=31 // pred_fallthru
          _
      $region32: #{tpu_custom_call.1} parent=5 // pred_fallthru
        _
      %p268 = scmp.le.s32.totalorder 2, %s12
      // Predicated region
      $region37: #{tpu_custom_call.1} parent=5 // pred_check
        %p269 = pneg %p268
      $region38: #{tpu_custom_call.1} parent=5 // pred_check_branch
        %271 = sbr.rel (%p269) target = $region40
      $region39: #{tpu_custom_call.1} parent=5 // pred_region
        %s272 = ssub.s32 %s12, 2
        // Predicated region
        $region41: #{tpu_custom_call.1} parent=39 // pred_check
          %p273 = pneg %p125
        $region42: #{tpu_custom_call.1} parent=39 // pred_check_branch
          %275 = sbr.rel (%p273) target = $region44
        $region43: #{tpu_custom_call.1} parent=39 // pred_region
          %s276 = sand.u32 %s110, 1
          %s277 = scalar_lea.sflag [#allocation3], %s276
          %s278 = sand.u32 %s110, 1
          %s279 = smul.addr %s278, 16
          %s280 = scalar_lea.vmem [#allocation2], %s279
          %282 = dma.done %s277, 256
        $region44: #{tpu_custom_call.1} parent=39 // pred_fallthru
          _
      $region40: #{tpu_custom_call.1} parent=5 // pred_fallthru
        _
    $region6: #{tpu_custom_call.1} parent=1 // loop_footer
      %s16 = sadd.s32 1, %s12
    $region7: #{tpu_custom_call.1} parent=1 // loop_footer_branch
      %11 = sbr.rel target = $region3
    $region8: #{tpu_custom_call.1} parent=1 // loop_exit
      _
    %283 = vsyncpa [#allocation3], 1
    %s284 = scalar_lea.sflag [#allocation3], 1
    %285 = vsyncpa %s284, 1

</llo_original>
